<compile_context>
chip_gen: v7x
topology: tpu7x:2x2x1
jax: 0.10.0
libtpu: 0.0.40
codegen_flags: <defaults>
</compile_context>

<pallas_src>
import jax
import jax.numpy as jnp
from jax.experimental import pallas as pl
from jax.experimental.pallas import tpu as pltpu


def _matmul_silu_kernel(x_ref, w_ref, o_ref):
    """Single-block fused matmul + SiLU (no accumulator, no grid phases)."""
    a = jnp.dot(x_ref[...], w_ref[...], preferred_element_type=jnp.float32)
    # SiLU(a) = a * sigmoid(a); epilogue stays in f32 (cheap on every generation).
    o_ref[...] = (a * jax.nn.sigmoid(a)).astype(o_ref.dtype)


def net_a_forward(x, w, *, operand_dtype=None, block_m=512):
    """SiLU(x @ w).

    x: [M, K] float32, w: [K, N] float32 -> [M, N] float32.
    operand_dtype: optionally cast matmul operands (e.g. jnp.bfloat16) at the
      kernel boundary; accumulation and the SiLU epilogue remain float32.
    """
    M, K = x.shape
    K2, N = w.shape
    assert K == K2

    if operand_dtype is not None:
        x = x.astype(operand_dtype)
        w = w.astype(operand_dtype)

    out_shape = jax.ShapeDtypeStruct((M, N), jnp.float32)

    if M <= block_m:
        # Whole problem in one VMEM-resident block: no grid, no pipeline
        # prologue/epilogue, no accumulator round-trip.
        return pl.pallas_call(
            _matmul_silu_kernel,
            out_shape=out_shape,
            in_specs=[
                pl.BlockSpec(memory_space=pltpu.MemorySpace.VMEM),
                pl.BlockSpec(memory_space=pltpu.MemorySpace.VMEM),
            ],
            out_specs=pl.BlockSpec(memory_space=pltpu.MemorySpace.VMEM),
        )(x, w)

    # Large-M path: tile rows; mark the axis "parallel" so megacore parts
    # (v7x: 2 TCs/chip) can split rows. K=512 stays un-tiled -> no accumulator.
    assert M % block_m == 0, "pad M to a multiple of block_m for the tiled path"
    grid = (M // block_m,)
    return pl.pallas_call(
        _matmul_silu_kernel,
        out_shape=out_shape,
        grid_spec=pl.GridSpec(
            grid=grid,
            in_specs=[
                pl.BlockSpec((block_m, K), lambda i: (i, 0)),
                pl.BlockSpec((K, N), lambda i: (0, 0)),
            ],
            out_specs=pl.BlockSpec((block_m, N), lambda i: (i, 0)),
        ),
        compiler_params=pltpu.CompilerParams(
            dimension_semantics=("parallel",),
        ),
    )(x, w)


if __name__ == "__main__":
    key = jax.random.PRNGKey(0)
    kx, kw = jax.random.split(key)

    # Module fixes filter shape to (512, 128); small batch of 8 rows for x.
    M, K, N = 8, 512, 128
    x = jax.random.normal(kx, (M, K), dtype=jnp.float32)
    w = jax.random.normal(kw, (K, N), dtype=jnp.float32)  # stand-in for torch.randn filter

    # f32 path (matches the torch module's numerics).
    out = net_a_forward(x, w)
    jax.block_until_ready(out)
    ref = jax.nn.silu(x @ w)
    assert out.shape == (M, N)
    assert jnp.allclose(out, ref, atol=1e-4, rtol=1e-4)

    # bf16-operand path (v6e/v7x fast path); compare against the same bf16
    # computation in plain JAX.
    out_bf16 = net_a_forward(x, w, operand_dtype=jnp.bfloat16)
    jax.block_until_ready(out_bf16)
    a_bf16 = jnp.dot(x.astype(jnp.bfloat16), w.astype(jnp.bfloat16),
                     preferred_element_type=jnp.float32)
    ref_bf16 = a_bf16 * jax.nn.sigmoid(a_bf16)
    assert jnp.allclose(out_bf16, ref_bf16, atol=1e-2, rtol=1e-2)

    print("KERNEL_OK")
</pallas_src>

<mosaic_0001>
module attributes {stable_mosaic.version = 11 : i64} {
  func.func @_matmul_silu_kernel(%arg0: memref<8x512xf32, #tpu.memory_space<vmem>>, %arg1: memref<512x128xf32, #tpu.memory_space<vmem>>, %arg2: memref<8x128xf32, #tpu.memory_space<vmem>>) attributes {dimension_semantics = [], scalar_prefetch = 0 : i64, scratch_operands = 0 : i64, tpu.core_type = #tpu.core_type<tc>} {
    %c0 = arith.constant 0 : index
    %c0_0 = arith.constant 0 : index
    %0 = vector.load %arg0[%c0, %c0_0] : memref<8x512xf32, #tpu.memory_space<vmem>>, vector<8x512xf32>
    %c0_1 = arith.constant 0 : index
    %c0_2 = arith.constant 0 : index
    %1 = vector.load %arg1[%c0_1, %c0_2] : memref<512x128xf32, #tpu.memory_space<vmem>>, vector<512x128xf32>
    %cst = arith.constant dense<0.000000e+00> : vector<8x128xf32>
    %2 = tpu.matmul %0, %1, %cst {dimension_numbers = #tpu.dot_dimension_numbers<[1], [0], [0], [1], [0, 0, 1, 1], [], []>} : vector<8x512xf32>, vector<512x128xf32>, vector<8x128xf32> -> vector<8x128xf32>
    %3 = arith.negf %2 : vector<8x128xf32>
    %4 = math.exp %3 : vector<8x128xf32>
    %cst_3 = arith.constant 1.000000e+00 : f32
    %5 = vector.broadcast %cst_3 : f32 to vector<8x128xf32>
    %6 = arith.addf %5, %4 : vector<8x128xf32>
    %7 = arith.divf %5, %6 : vector<8x128xf32>
    %8 = arith.mulf %2, %7 : vector<8x128xf32>
    %c0_4 = arith.constant 0 : index
    %c0_5 = arith.constant 0 : index
    %9 = vector.load %arg2[%c0_4, %c0_5] : memref<8x128xf32, #tpu.memory_space<vmem>>, vector<8x128xf32>
    tpu.vector_store %arg2[%c0_4, %c0_5], %8 {strides = array<i32>} : memref<8x128xf32, #tpu.memory_space<vmem>>, vector<8x128xf32>,
    return
  }
}

</mosaic_0001>

<llo_original>
// kernel: tpu_custom_call.1
$region0: #{tpu_custom_call.1}
  #allocation0 [shape = 'u32[]', space=smem, size = 0x4, offset = 0x4, fixed_abs, tag = 'smem constant byte address 0x4 - core index']
  #allocation1 [shape = 'u32[144,128]{1,0:T(1,128)}', space=vmem, size = 0x12000, scoped, tag = 'internal scratch']
  %s0 = inlined_call_operand.hbm [shape: f32[8,512], index: 0, kind: input, shape index: {}]
  %s1 = inlined_call_operand.hbm [shape: f32[512,128], index: 1, kind: input, shape index: {}]
  %s2 = inlined_call_operand.hbm [shape: f32[8,128], index: 2, kind: output, shape index: {}]
  %s3 = sld [smem:[#allocation0]]
  $region26: #{tpu_custom_call.1} parent=0
    _
  %s5 = ssub.s32 1, %s3
  %s6 = scalar_select 0, %s5, %s3
  $region1: #{tpu_custom_call.1} parent=0
    #allocation2 [shape = 'u8[16384]{0}', space=vmem, size = 0x4000, scoped, tag = 'input window, operand 0, single buffered']
    #allocation3 [shape = 's32[1]{0}', space=sflag, size = 0x4, scoped, tag = 'scoped memory for tpu_custom_call.1']
    #allocation4 [shape = 's32[1]{0}', space=sflag, size = 0x4, scoped, tag = 'scoped memory for tpu_custom_call.1']
    #allocation5 [shape = 'u8[262144]{0}', space=vmem, size = 0x40000, scoped, tag = 'input window, operand 1, single buffered']
    #allocation6 [shape = 's32[1]{0}', space=sflag, size = 0x4, scoped, tag = 'scoped memory for tpu_custom_call.1']
    #allocation7 [shape = 'u8[4096]{0}', space=vmem, size = 0x1000, scoped, tag = 'output window, operand 0, single buffered']
    %7 = vsyncpa [#allocation3], 0
    %8 = vsyncpa [#allocation6], 0
    %9 = vsyncpa [#allocation4], 0
    // Predicated region
    $region2: #{tpu_custom_call.1} parent=1 // pred_check
      _
    $region3: #{tpu_custom_call.1} parent=1 // pred_check_branch
      %11 = sbr.rel (0) target = $region5
    $region4: #{tpu_custom_call.1} parent=1 // pred_region
      %s13 = ssub.s32 512, 512
      %14 = vsyncadd [#allocation3], %s13
      %s16 = sshll.u32 [#allocation2], 4
      %s17 = int_to_ptr.vmem [resolvable:$true] %s16
      %19 = dma.hbm_to_vmem [thread:$0]  %s0, 512, %s17, [#allocation3]
    $region5: #{tpu_custom_call.1} parent=1 // pred_fallthru
      _
    // Predicated region
    $region6: #{tpu_custom_call.1} parent=1 // pred_check
      _
    $region7: #{tpu_custom_call.1} parent=1 // pred_check_branch
      %21 = sbr.rel (0) target = $region9
    $region8: #{tpu_custom_call.1} parent=1 // pred_region
      %s23 = ssub.s32 8192, 8192
      %24 = vsyncadd [#allocation6], %s23
      %s25 = sshll.u32 [#allocation5], 4
      %s26 = int_to_ptr.vmem [resolvable:$true] %s25
      %31 = dma.hbm_to_vmem [thread:$0]  %s1, 8192, %s26, [#allocation6], 128, 128, 8
    $region9: #{tpu_custom_call.1} parent=1 // pred_fallthru
      _
    // Predicated region
    $region10: #{tpu_custom_call.1} parent=1 // pred_check
      _
    $region11: #{tpu_custom_call.1} parent=1 // pred_check_branch
      %33 = sbr.rel (0) target = $region13
    $region12: #{tpu_custom_call.1} parent=1 // pred_region
      %34 = dma.done [#allocation3], 512
    $region13: #{tpu_custom_call.1} parent=1 // pred_fallthru
      _
    // Predicated region
    $region14: #{tpu_custom_call.1} parent=1 // pred_check
      _
    $region15: #{tpu_custom_call.1} parent=1 // pred_check_branch
      %36 = sbr.rel (0) target = $region17
    $region16: #{tpu_custom_call.1} parent=1 // pred_region
      %37 = dma.done [#allocation6], 8192
    $region17: #{tpu_custom_call.1} parent=1 // pred_fallthru
      _
    %v38 = vld [vmem:[#allocation2] sm:$0xff]
    %v39 = vld [vmem:[#allocation2 + $0x8] sm:$0xff]
    %v40 = vld [vmem:[#allocation2 + $0x10] sm:$0xff]
    %v41 = vld [vmem:[#allocation2 + $0x18] sm:$0xff]
    %v42 = vld [vmem:[#allocation5] sm:$0xff]
    %v43 = vld [vmem:[#allocation5 + $0x8] sm:$0xff]
    %v44 = vld [vmem:[#allocation5 + $0x10] sm:$0xff]
    %v45 = vld [vmem:[#allocation5 + $0x18] sm:$0xff]
    %v46 = vld [vmem:[#allocation5 + $0x20] sm:$0xff]
    %v47 = vld [vmem:[#allocation5 + $0x28] sm:$0xff]
    %v48 = vld [vmem:[#allocation5 + $0x30] sm:$0xff]
    %v49 = vld [vmem:[#allocation5 + $0x38] sm:$0xff]
    %v50 = vld [vmem:[#allocation5 + $0x40] sm:$0xff]
    %v51 = vld [vmem:[#allocation5 + $0x48] sm:$0xff]
    %v52 = vld [vmem:[#allocation5 + $0x50] sm:$0xff]
    %v53 = vld [vmem:[#allocation5 + $0x58] sm:$0xff]
    %v54 = vld [vmem:[#allocation5 + $0x60] sm:$0xff]
    %v55 = vld [vmem:[#allocation5 + $0x68] sm:$0xff]
    %v56 = vld [vmem:[#allocation5 + $0x70] sm:$0xff]
    %v57 = vld [vmem:[#allocation5 + $0x78] sm:$0xff]
    %v58 = vld [vmem:[#allocation5 + $0x80] sm:$0xff]
    %v59 = vld [vmem:[#allocation5 + $0x88] sm:$0xff]
    %v60 = vld [vmem:[#allocation5 + $0x90] sm:$0xff]
    %v61 = vld [vmem:[#allocation5 + $0x98] sm:$0xff]
    %v62 = vld [vmem:[#allocation5 + $0xa0] sm:$0xff]
    %v63 = vld [vmem:[#allocation5 + $0xa8] sm:$0xff]
    %v64 = vld [vmem:[#allocation5 + $0xb0] sm:$0xff]
    %v65 = vld [vmem:[#allocation5 + $0xb8] sm:$0xff]
    %v66 = vld [vmem:[#allocation5 + $0xc0] sm:$0xff]
    %v67 = vld [vmem:[#allocation5 + $0xc8] sm:$0xff]
    %v68 = vld [vmem:[#allocation5 + $0xd0] sm:$0xff]
    %v69 = vld [vmem:[#allocation5 + $0xd8] sm:$0xff]
    %v70 = vld [vmem:[#allocation5 + $0xe0] sm:$0xff]
    %v71 = vld [vmem:[#allocation5 + $0xe8] sm:$0xff]
    %v72 = vld [vmem:[#allocation5 + $0xf0] sm:$0xff]
    %v73 = vld [vmem:[#allocation5 + $0xf8] sm:$0xff]
    %v74 = vld [vmem:[#allocation5 + $0x100] sm:$0xff]
    %v75 = vld [vmem:[#allocation5 + $0x108] sm:$0xff]
    %v76 = vld [vmem:[#allocation5 + $0x110] sm:$0xff]
    %v77 = vld [vmem:[#allocation5 + $0x118] sm:$0xff]
    %v78 = vld [vmem:[#allocation5 + $0x120] sm:$0xff]
    %v79 = vld [vmem:[#allocation5 + $0x128] sm:$0xff]
    %v80 = vld [vmem:[#allocation5 + $0x130] sm:$0xff]
    %v81 = vld [vmem:[#allocation5 + $0x138] sm:$0xff]
    %v82 = vld [vmem:[#allocation5 + $0x140] sm:$0xff]
    %v83 = vld [vmem:[#allocation5 + $0x148] sm:$0xff]
    %v84 = vld [vmem:[#allocation5 + $0x150] sm:$0xff]
    %v85 = vld [vmem:[#allocation5 + $0x158] sm:$0xff]
    %v86 = vld [vmem:[#allocation5 + $0x160] sm:$0xff]
    %v87 = vld [vmem:[#allocation5 + $0x168] sm:$0xff]
    %v88 = vld [vmem:[#allocation5 + $0x170] sm:$0xff]
    %v89 = vld [vmem:[#allocation5 + $0x178] sm:$0xff]
    %v90 = vld [vmem:[#allocation5 + $0x180] sm:$0xff]
    %v91 = vld [vmem:[#allocation5 + $0x188] sm:$0xff]
    %v92 = vld [vmem:[#allocation5 + $0x190] sm:$0xff]
    %v93 = vld [vmem:[#allocation5 + $0x198] sm:$0xff]
    %v94 = vld [vmem:[#allocation5 + $0x1a0] sm:$0xff]
    %v95 = vld [vmem:[#allocation5 + $0x1a8] sm:$0xff]
    %v96 = vld [vmem:[#allocation5 + $0x1b0] sm:$0xff]
    %v97 = vld [vmem:[#allocation5 + $0x1b8] sm:$0xff]
    %v98 = vld [vmem:[#allocation5 + $0x1c0] sm:$0xff]
    %v99 = vld [vmem:[#allocation5 + $0x1c8] sm:$0xff]
    %v100 = vld [vmem:[#allocation5 + $0x1d0] sm:$0xff]
    %v101 = vld [vmem:[#allocation5 + $0x1d8] sm:$0xff]
    %v102 = vld [vmem:[#allocation5 + $0x1e0] sm:$0xff]
    %v103 = vld [vmem:[#allocation5 + $0x1e8] sm:$0xff]
    %v104 = vld [vmem:[#allocation5 + $0x1f0] sm:$0xff]
    %v105 = vld [vmem:[#allocation5 + $0x1f8] sm:$0xff]
    %106 = vmatprep.subr.mxu0 0.0
    %107 = vmatpush1.msra.mxu0 %v42
    %108 = vmatprep.subr.mxu0 0.0
    %109 = vmatpush1.msra.mxu0 %v43
    %110 = vmatprep.subr.mxu0 0.0
    %111 = vmatpush1.msra.mxu0 %v44
    %112 = vmatprep.subr.mxu0 0.0
    %113 = vmatpush1.msra.mxu0 %v45
    %114 = vmatprep.subr.mxu0 0.0
    %115 = vmatpush1.msra.mxu0 %v46
    %116 = vmatprep.subr.mxu0 0.0
    %117 = vmatpush1.msra.mxu0 %v47
    %118 = vmatprep.subr.mxu0 0.0
    %119 = vmatpush1.msra.mxu0 %v48
    %120 = vmatprep.subr.mxu0 0.0
    %121 = vmatpush1.msra.mxu0 %v49
    %122 = vmatprep.subr.mxu0 0.0
    %123 = vmatpush1.msra.mxu0 %v50
    %124 = vmatprep.subr.mxu0 0.0
    %125 = vmatpush1.msra.mxu0 %v51
    %126 = vmatprep.subr.mxu0 0.0
    %127 = vmatpush1.msra.mxu0 %v52
    %128 = vmatprep.subr.mxu0 0.0
    %129 = vmatpush1.msra.mxu0 %v53
    %130 = vmatprep.subr.mxu0 0.0
    %131 = vmatpush1.msra.mxu0 %v54
    %132 = vmatprep.subr.mxu0 0.0
    %133 = vmatpush1.msra.mxu0 %v55
    %134 = vmatprep.subr.mxu0 0.0
    %135 = vmatpush1.msra.mxu0 %v56
    %136 = vmatprep.subr.mxu0 0.0
    %137 = vmatpush1.msra.mxu0 %v57
    %138 = vmatprep.subr.mxu0 0.0
    %139 = vmatpush1.msra.mxu0 %v58
    %140 = vmatprep.subr.mxu0 0.0
    %141 = vmatpush1.msra.mxu0 %v59
    %142 = vmatprep.subr.mxu0 0.0
    %143 = vmatpush1.msra.mxu0 %v60
    %144 = vmatprep.subr.mxu0 0.0
    %145 = vmatpush1.msra.mxu0 %v61
    %146 = vmatprep.subr.mxu0 0.0
    %147 = vmatpush1.msra.mxu0 %v62
    %148 = vmatprep.subr.mxu0 0.0
    %149 = vmatpush1.msra.mxu0 %v63
    %150 = vmatprep.subr.mxu0 0.0
    %151 = vmatpush1.msra.mxu0 %v64
    %152 = vmatprep.subr.mxu0 0.0
    %153 = vmatpush1.msra.mxu0 %v65
    %154 = vmatprep.subr.mxu0 0.0
    %155 = vmatpush1.msra.mxu0 %v66
    %156 = vmatprep.subr.mxu0 0.0
    %157 = vmatpush1.msra.mxu0 %v67
    %158 = vmatprep.subr.mxu0 0.0
    %159 = vmatpush1.msra.mxu0 %v68
    %160 = vmatprep.subr.mxu0 0.0
    %161 = vmatpush1.msra.mxu0 %v69
    %162 = vmatprep.subr.mxu0 0.0
    %163 = vmatpush1.msra.mxu0 %v70
    %164 = vmatprep.subr.mxu0 0.0
    %165 = vmatpush1.msra.mxu0 %v71
    %166 = vmatprep.subr.mxu0 0.0
    %167 = vmatpush1.msra.mxu0 %v72
    %168 = vmatprep.subr.mxu0 0.0
    %169 = vmatpush1.msra.mxu0 %v73
    %170 = vmatprep.mubr.f32.mxu0 %v39
    %171 = vmatmul.mubr.f32.gmra.mrb[0].mxu0 %v38
    %v172 = vpop.f32.mrb[0].mxu0
    %v173 = vadd.f32 0.0, %v172
    %v174 = vpop.f32.mrb[0].mxu0
    %175 = vdwg.mxu0
    %176 = vmatprep.subr.mxu0 0.0
    %177 = vmatpush1.msra.mxu0 %v74
    %178 = vmatprep.subr.mxu0 0.0
    %179 = vmatpush1.msra.mxu0 %v75
    %180 = vmatprep.subr.mxu0 0.0
    %181 = vmatpush1.msra.mxu0 %v76
    %182 = vmatprep.subr.mxu0 0.0
    %183 = vmatpush1.msra.mxu0 %v77
    %184 = vmatprep.subr.mxu0 0.0
    %185 = vmatpush1.msra.mxu0 %v78
    %186 = vmatprep.subr.mxu0 0.0
    %187 = vmatpush1.msra.mxu0 %v79
    %188 = vmatprep.subr.mxu0 0.0
    %189 = vmatpush1.msra.mxu0 %v80
    %190 = vmatprep.subr.mxu0 0.0
    %191 = vmatpush1.msra.mxu0 %v81
    %192 = vmatprep.subr.mxu0 0.0
    %193 = vmatpush1.msra.mxu0 %v82
    %194 = vmatprep.subr.mxu0 0.0
    %195 = vmatpush1.msra.mxu0 %v83
    %196 = vmatprep.subr.mxu0 0.0
    %197 = vmatpush1.msra.mxu0 %v84
    %198 = vmatprep.subr.mxu0 0.0
    %199 = vmatpush1.msra.mxu0 %v85
    %200 = vmatprep.subr.mxu0 0.0
    %201 = vmatpush1.msra.mxu0 %v86
    %202 = vmatprep.subr.mxu0 0.0
    %203 = vmatpush1.msra.mxu0 %v87
    %204 = vmatprep.subr.mxu0 0.0
    %205 = vmatpush1.msra.mxu0 %v88
    %206 = vmatprep.subr.mxu0 0.0
    %207 = vmatpush1.msra.mxu0 %v89
    %208 = vmatprep.subr.mxu0 0.0
    %209 = vmatpush1.msra.mxu0 %v90
    %210 = vmatprep.subr.mxu0 0.0
    %211 = vmatpush1.msra.mxu0 %v91
    %212 = vmatprep.subr.mxu0 0.0
    %213 = vmatpush1.msra.mxu0 %v92
    %214 = vmatprep.subr.mxu0 0.0
    %215 = vmatpush1.msra.mxu0 %v93
    %216 = vmatprep.subr.mxu0 0.0
    %217 = vmatpush1.msra.mxu0 %v94
    %218 = vmatprep.subr.mxu0 0.0
    %219 = vmatpush1.msra.mxu0 %v95
    %220 = vmatprep.subr.mxu0 0.0
    %221 = vmatpush1.msra.mxu0 %v96
    %222 = vmatprep.subr.mxu0 0.0
    %223 = vmatpush1.msra.mxu0 %v97
    %224 = vmatprep.subr.mxu0 0.0
    %225 = vmatpush1.msra.mxu0 %v98
    %226 = vmatprep.subr.mxu0 0.0
    %227 = vmatpush1.msra.mxu0 %v99
    %228 = vmatprep.subr.mxu0 0.0
    %229 = vmatpush1.msra.mxu0 %v100
    %230 = vmatprep.subr.mxu0 0.0
    %231 = vmatpush1.msra.mxu0 %v101
    %232 = vmatprep.subr.mxu0 0.0
    %233 = vmatpush1.msra.mxu0 %v102
    %234 = vmatprep.subr.mxu0 0.0
    %235 = vmatpush1.msra.mxu0 %v103
    %236 = vmatprep.subr.mxu0 0.0
    %237 = vmatpush1.msra.mxu0 %v104
    %238 = vmatprep.subr.mxu0 0.0
    %239 = vmatpush1.msra.mxu0 %v105
    %240 = vmatprep.mubr.f32.mxu0 %v41
    %241 = vmatmul.mubr.f32.gmra.mrb[0].mxu0 %v40
    %v242 = vpop.f32.mrb[0].mxu0
    %v243 = vadd.f32 %v173, %v242
    %v244 = vpop.f32.mrb[0].mxu0
    %245 = vdwg.mxu0
    %v246 = vxor.u32 %v243, 2147483648
    %v247 = vmul.f32 %v246, 1.442695
    %v248 = vpow.pop %v247
    %v249 = vadd.f32 %v248, 1.0
    %v250 = vrcp.pop %v249
    %v251 = vmul.f32 1.0, %v250
    %v252 = vmul.f32 %v243, %v251
    %253 = vst [vmem:[#allocation7] sm:$0xff] %v252
    // Predicated region
    $region18: #{tpu_custom_call.1} parent=1 // pred_check
      _
    $region19: #{tpu_custom_call.1} parent=1 // pred_check_branch
      %255 = sbr.rel (0) target = $region21
    $region20: #{tpu_custom_call.1} parent=1 // pred_region
      %s257 = ssub.s32 128, 128
      %258 = vsyncadd [#allocation4], %s257
      %s260 = sshll.u32 [#allocation7], 4
      %s261 = int_to_ptr.vmem [resolvable:$true] %s260
      %263 = dma.vmem_to_hbm [thread:$0]  %s261, 128, %s2, [#allocation4]
    $region21: #{tpu_custom_call.1} parent=1 // pred_fallthru
      _
    // Predicated region
    $region22: #{tpu_custom_call.1} parent=1 // pred_check
      _
    $region23: #{tpu_custom_call.1} parent=1 // pred_check_branch
      %265 = sbr.rel (0) target = $region25
    $region24: #{tpu_custom_call.1} parent=1 // pred_region
      %266 = dma.done [#allocation4], 128
    $region25: #{tpu_custom_call.1} parent=1 // pred_fallthru
      _
    %267 = vsyncpa [#allocation3], 1
    %268 = vsyncpa [#allocation6], 1
    %269 = vsyncpa [#allocation4], 1

</llo_original>
